<compile_context>
chip_gen: v6e
topology: v6e:2x2x1
jax: 0.10.0
libtpu: 0.0.40
codegen_flags: <defaults>
</compile_context>

<pallas_src>
import functools

import jax
import jax.numpy as jnp
from jax.experimental import pallas as pl
from jax.experimental.pallas import tpu as pltpu

KERNEL_SIZES = (3, 4, 5)


def _text_cnn_kernel(tok_ref, emb_ref, wf_ref, bf_ref, lw_ref, lb_ref, out_ref,
                     *, seq_len):
    L = seq_len
    NB = len(KERNEL_SIZES)
    KMAX = max(KERNEL_SIZES)
    BB = out_ref.shape[0]              # batch rows handled by this grid step
    V, E = emb_ref.shape
    NBC = wf_ref.shape[1]              # 3 * n_kernels
    C = NBC // NB
    T = L + KMAX - 1                   # conv output length for the largest kernel

    # ---- embedding lookup: one-hot matmul (table is tiny and VMEM resident).
    # TODO(synk): at realistic vocab sizes switch to a scalar-prefetch row gather /
    # manual DMA gather; the one-hot matmul only makes sense while V is tiny (V=50).
    tok = tok_ref[...]                                              # [BB*L, 1] int32
    onehot = (jax.lax.broadcasted_iota(jnp.int32, (BB * L, V), 1) == tok)
    emb = jnp.dot(onehot.astype(jnp.float32), emb_ref[...],
                  preferred_element_type=jnp.float32)               # [BB*L, E]
    emb3 = emb.reshape(BB, L, E)

    # ---- im2col: tap j of the fused conv reads emb[t + j - (KMAX-1)], i.e. emb with
    # (KMAX-1-j) leading / j trailing zero time-rows.  Build the KMAX shifted copies by
    # zero-concat only (no sublane-offset slices), lane-concat them into one
    # [BB*T, KMAX*E] LHS and run a single MXU matmul against the fused [KMAX*E, 3C] RHS.
    taps = []
    for j in range(KMAX):                                           # static unroll (5)
        lead, trail = KMAX - 1 - j, j
        parts = []
        if lead:
            parts.append(jnp.zeros((BB, lead, E), jnp.float32))
        parts.append(emb3)
        if trail:
            parts.append(jnp.zeros((BB, trail, E), jnp.float32))
        taps.append(jnp.concatenate(parts, axis=1).reshape(BB * T, E))
    im2col = jnp.concatenate(taps, axis=-1)                         # [BB*T, KMAX*E]

    y = jnp.dot(im2col, wf_ref[...],
                preferred_element_type=jnp.float32)                 # [BB*T, NBC]
    act = jnp.maximum(y.reshape(BB, T, NBC) + bf_ref[...][None], 0.0)

    # ---- mask time steps beyond each kernel size's true output length (T_k = L+k-1)
    # with a large negative (robust even if the activation ever changes), then max-pool.
    t_iota = jax.lax.broadcasted_iota(jnp.int32, (T, NBC), 0)
    c_iota = jax.lax.broadcasted_iota(jnp.int32, (T, NBC), 1)
    valid = jnp.zeros((T, NBC), jnp.bool_)
    for bidx, k in enumerate(KERNEL_SIZES):
        blk = (c_iota >= bidx * C) & (c_iota < (bidx + 1) * C)
        valid = valid | (blk & (t_iota < (L + k - 1)))
    pooled = jnp.max(jnp.where(valid[None], act, -1e30), axis=1)    # [BB, NBC]

    # ---- linear (lane-padded to OPAD=128) + log-softmax.  Padding columns carry a
    # -1e30 bias so exp underflows to 0: the real-column log-softmax is unchanged and
    # the final store stays a full 128-lane (unmasked) vst.
    # TODO(synk): dropout_cnn is identity at inference (eval mode).
    logits = jnp.dot(pooled, lw_ref[...],
                     preferred_element_type=jnp.float32) + lb_ref[...]   # [BB, OPAD]
    m = jnp.max(logits, axis=1, keepdims=True)
    z = logits - m
    lse = jnp.log(jnp.sum(jnp.exp(z), axis=1, keepdims=True))
    out_ref[...] = z - lse


def _fuse_conv_params(params):
    """Fuse the per-kernel-size conv weights into one tap-aligned RHS.

    Row block j (rows j*E:(j+1)*E) holds tap j of each conv, right-aligned:
    Wf[j][:, block_k] = w_k[j - (KMAX - k)] for j >= KMAX - k, zeros otherwise,
    so all convs share the same KMAX time-shifted input copies (im2col columns).
    """
    w0 = params[f"conv{KERNEL_SIZES[0]}_w"]
    E, C = w0.shape[1], w0.shape[2]
    NB = len(KERNEL_SIZES)
    KMAX = max(KERNEL_SIZES)
    wf = jnp.zeros((KMAX, E, NB * C), jnp.float32)
    for bidx, k in enumerate(KERNEL_SIZES):
        wf = wf.at[KMAX - k:, :, bidx * C:(bidx + 1) * C].set(params[f"conv{k}_w"])
    bf = jnp.concatenate([params[f"conv{k}_b"] for k in KERNEL_SIZES], axis=1)
    return wf.reshape(KMAX * E, NB * C), bf


def _pick_batch_tile(B):
    """Batch rows per grid step (multiple of 8).

    Small B: one padded 8-row tile.  Mid B: ~B/2 rounded to 8 so there are >=2 grid
    steps and v7x's two TensorCores both get work.  Large B: 32-row tiles so
    M = 32*T MXU rows amortize the ~0.35us per-step pipeline overhead.
    """
    if B <= 8:
        return 8
    if B <= 64:
        return max(8, 8 * pl.cdiv(pl.cdiv(B, 2), 8))
    return 32


def init_params(key, vocab_size, embedding_size, output_size, n_kernels):
    ks = jax.random.split(key, 2 + 2 * len(KERNEL_SIZES) + 2)
    params = {
        "embedding": 0.1 * jax.random.normal(ks[0], (vocab_size, embedding_size),
                                             jnp.float32),
        "linear_w": 0.1 * jax.random.normal(ks[1],
                                            (len(KERNEL_SIZES) * n_kernels, output_size),
                                            jnp.float32),
        "linear_b": 0.01 * jax.random.normal(ks[2], (1, output_size), jnp.float32),
    }
    for i, k in enumerate(KERNEL_SIZES):
        params[f"conv{k}_w"] = 0.1 * jax.random.normal(
            ks[3 + 2 * i], (k, embedding_size, n_kernels), jnp.float32)
        params[f"conv{k}_b"] = 0.01 * jax.random.normal(
            ks[4 + 2 * i], (1, n_kernels), jnp.float32)
    return params


def language_recognition_cnn(tokens, seq_lengths, params, *, batch_tile=None):
    del seq_lengths                     # unused by the reference forward
    B, L = tokens.shape
    V, E = params["embedding"].shape
    C = params[f"conv{KERNEL_SIZES[0]}_w"].shape[2]
    O = params["linear_w"].shape[1]
    NB = len(KERNEL_SIZES)
    KMAX = max(KERNEL_SIZES)
    NBC = NB * C
    OPAD = max(128, 128 * pl.cdiv(O, 128))     # lane-dense output width

    wf, bf = _fuse_conv_params(params)
    # Lane-pad the classifier: zero weight columns + -1e30 bias for pad columns keep
    # the in-kernel log-softmax over real columns exact while the store is 128 lanes.
    lw_pad = jnp.zeros((NBC, OPAD), jnp.float32).at[:, :O].set(params["linear_w"])
    lb_pad = jnp.full((1, OPAD), -1e30, jnp.float32).at[:, :O].set(params["linear_b"])

    bb = batch_tile if batch_tile is not None else _pick_batch_tile(B)
    Bp = pl.cdiv(B, bb) * bb
    tok = tokens.astype(jnp.int32)
    if Bp != B:
        # Padded batch rows are token 0 -> defined, finite outputs, sliced off below.
        tok = jnp.concatenate([tok, jnp.zeros((Bp - B, L), jnp.int32)], axis=0)
    tok2 = tok.reshape(Bp * L, 1)
    grid = (Bp // bb,)

    T = L + KMAX - 1
    cost = pl.CostEstimate(
        flops=(2 * Bp * L * V * E            # one-hot embedding matmul
               + 2 * Bp * T * (KMAX * E) * NBC   # fused im2col conv matmul
               + 2 * Bp * NBC * OPAD),       # classifier
        transcendentals=Bp * OPAD,           # exp in log-softmax
        bytes_accessed=4 * (Bp * L + V * E + KMAX * E * NBC + NBC
                            + NBC * OPAD + OPAD + Bp * OPAD))

    kernel = functools.partial(_text_cnn_kernel, seq_len=L)
    out = pl.pallas_call(
        kernel,
        out_shape=jax.ShapeDtypeStruct((Bp, OPAD), jnp.float32),
        grid=grid,
        in_specs=[
            pl.BlockSpec((bb * L, 1), lambda i: (i, 0)),            # tokens
            pl.BlockSpec((V, E), lambda i: (0, 0)),                 # embedding table
            pl.BlockSpec((KMAX * E, NBC), lambda i: (0, 0)),        # fused conv weight
            pl.BlockSpec((1, NBC), lambda i: (0, 0)),               # fused conv bias
            pl.BlockSpec((NBC, OPAD), lambda i: (0, 0)),            # padded linear w
            pl.BlockSpec((1, OPAD), lambda i: (0, 0)),              # padded linear b
        ],
        out_specs=pl.BlockSpec((bb, OPAD), lambda i: (i, 0)),
        compiler_params=pltpu.CompilerParams(
            dimension_semantics=("parallel",)),
        cost_estimate=cost,
    )(tok2, params["embedding"], wf, bf, lw_pad, lb_pad)
    return out[:B, :O]


def _reference(tokens, params):
    """Pure-JAX reference mirroring the PyTorch forward (eval mode)."""
    emb = jnp.take(params["embedding"], tokens, axis=0)
    B, L, _ = emb.shape
    feats = []
    for k in KERNEL_SIZES:
        xp = jnp.pad(emb, ((0, 0), (k - 1, k - 1), (0, 0)))
        T = L + k - 1
        w = params[f"conv{k}_w"]
        acc = sum(jnp.einsum("ble,ec->blc", xp[:, dk:dk + T, :], w[dk]) for dk in range(k))
        acc = jax.nn.relu(acc + params[f"conv{k}_b"][None])
        feats.append(jnp.max(acc, axis=1))
    feat = jnp.concatenate(feats, axis=1)
    logits = feat @ params["linear_w"] + params["linear_b"]
    return jax.nn.log_softmax(logits, axis=1)


if __name__ == "__main__":
    vocab_size, embedding_size, output_size = 50, 32, 5
    n_kernels = 16
    batch, seq_len = 2, 8

    key = jax.random.PRNGKey(0)
    pkey, tkey, lkey = jax.random.split(key, 3)
    params = init_params(pkey, vocab_size, embedding_size, output_size, n_kernels)

    tokens = jax.random.randint(tkey, (batch, seq_len), 0, vocab_size, dtype=jnp.int32)
    seq_lengths = jnp.full((batch,), seq_len, dtype=jnp.int32)

    out = language_recognition_cnn(tokens, seq_lengths, params)
    out = jax.block_until_ready(out)

    ref = _reference(tokens, params)
    assert out.shape == (batch, output_size)
    assert jnp.allclose(out, ref, atol=1e-4, rtol=1e-4), "mismatch vs JAX reference"

    print("KERNEL_OK")
</pallas_src>

<mosaic_0001>
module attributes {stable_mosaic.version = 11 : i64} {
  func.func @_text_cnn_kernel(%arg0: i32, %arg1: memref<64x1xi32, #tpu.memory_space<vmem>>, %arg2: memref<50x32xf32, #tpu.memory_space<vmem>>, %arg3: memref<160x48xf32, #tpu.memory_space<vmem>>, %arg4: memref<1x48xf32, #tpu.memory_space<vmem>>, %arg5: memref<48x128xf32, #tpu.memory_space<vmem>>, %arg6: memref<1x128xf32, #tpu.memory_space<vmem>>, %arg7: memref<8x128xf32, #tpu.memory_space<vmem>>) attributes {dimension_semantics = [#tpu.dimension_semantics<parallel>], iteration_bounds = array<i64: 1>, scalar_prefetch = 0 : i64, scratch_operands = 0 : i64, tpu.core_type = #tpu.core_type<tc>, window_params = [{transform_indices = @transform_0, window_bounds = array<i64: 64, 1>}, {pipeline_mode = #tpu.pipeline_mode<synchronous>, transform_indices = @transform_1, window_bounds = array<i64: 50, 32>}, {pipeline_mode = #tpu.pipeline_mode<synchronous>, transform_indices = @transform_2, window_bounds = array<i64: 160, 48>}, {pipeline_mode = #tpu.pipeline_mode<synchronous>, transform_indices = @transform_3, window_bounds = array<i64: 1, 48>}, {pipeline_mode = #tpu.pipeline_mode<synchronous>, transform_indices = @transform_4, window_bounds = array<i64: 48, 128>}, {pipeline_mode = #tpu.pipeline_mode<synchronous>, transform_indices = @transform_5, window_bounds = array<i64: 1, 128>}, {transform_indices = @transform_6, window_bounds = array<i64: 8, 128>}]} {
    %c0 = arith.constant 0 : index
    %c0_0 = arith.constant 0 : index
    %0 = vector.load %arg1[%c0, %c0_0] : memref<64x1xi32, #tpu.memory_space<vmem>>, vector<64x1xi32>
    %1 = tpu.iota {dimensions = array<i32: 1>} : vector<64x50xi32>
    %2 = vector.broadcast %0 : vector<64x1xi32> to vector<64x50xi32>
    %3 = arith.cmpi eq, %1, %2 : vector<64x50xi32>
    %4 = arith.extui %3 : vector<64x50xi1> to vector<64x50xi32>
    %5 = arith.sitofp %4 : vector<64x50xi32> to vector<64x50xf32>
    %c0_1 = arith.constant 0 : index
    %c0_2 = arith.constant 0 : index
    %6 = vector.load %arg2[%c0_1, %c0_2] : memref<50x32xf32, #tpu.memory_space<vmem>>, vector<50x32xf32>
    %cst = arith.constant dense<0.000000e+00> : vector<64x32xf32>
    %7 = tpu.matmul %5, %6, %cst {dimension_numbers = #tpu.dot_dimension_numbers<[1], [0], [0], [1], [0, 0, 1, 1], [], []>} : vector<64x50xf32>, vector<50x32xf32>, vector<64x32xf32> -> vector<64x32xf32>
    %8 = vector.shape_cast %7 : vector<64x32xf32> to vector<8x8x32xf32>
    %cst_3 = arith.constant 0.000000e+00 : f32
    %9 = vector.broadcast %cst_3 : f32 to vector<8x4x32xf32>
    %10 = tpu.concatenate %9, %8 in 1 : vector<8x4x32xf32>, vector<8x8x32xf32> -> vector<8x12x32xf32>
    %11 = vector.shape_cast %10 : vector<8x12x32xf32> to vector<96x32xf32>
    %cst_4 = arith.constant 0.000000e+00 : f32
    %12 = vector.broadcast %cst_4 : f32 to vector<8x3x32xf32>
    %cst_5 = arith.constant 0.000000e+00 : f32
    %13 = vector.broadcast %cst_5 : f32 to vector<8x1x32xf32>
    %14 = tpu.concatenate %12, %8, %13 in 1 : vector<8x3x32xf32>, vector<8x8x32xf32>, vector<8x1x32xf32> -> vector<8x12x32xf32>
    %15 = vector.shape_cast %14 : vector<8x12x32xf32> to vector<96x32xf32>
    %cst_6 = arith.constant 0.000000e+00 : f32
    %16 = vector.broadcast %cst_6 : f32 to vector<8x2x32xf32>
    %cst_7 = arith.constant 0.000000e+00 : f32
    %17 = vector.broadcast %cst_7 : f32 to vector<8x2x32xf32>
    %18 = tpu.concatenate %16, %8, %17 in 1 : vector<8x2x32xf32>, vector<8x8x32xf32>, vector<8x2x32xf32> -> vector<8x12x32xf32>
    %19 = vector.shape_cast %18 : vector<8x12x32xf32> to vector<96x32xf32>
    %cst_8 = arith.constant 0.000000e+00 : f32
    %20 = vector.broadcast %cst_8 : f32 to vector<8x1x32xf32>
    %cst_9 = arith.constant 0.000000e+00 : f32
    %21 = vector.broadcast %cst_9 : f32 to vector<8x3x32xf32>
    %22 = tpu.concatenate %20, %8, %21 in 1 : vector<8x1x32xf32>, vector<8x8x32xf32>, vector<8x3x32xf32> -> vector<8x12x32xf32>
    %23 = vector.shape_cast %22 : vector<8x12x32xf32> to vector<96x32xf32>
    %cst_10 = arith.constant 0.000000e+00 : f32
    %24 = vector.broadcast %cst_10 : f32 to vector<8x4x32xf32>
    %25 = tpu.concatenate %8, %24 in 1 : vector<8x8x32xf32>, vector<8x4x32xf32> -> vector<8x12x32xf32>
    %26 = vector.shape_cast %25 : vector<8x12x32xf32> to vector<96x32xf32>
    %27 = tpu.concatenate %11, %15, %19, %23, %26 in 1 : vector<96x32xf32>, vector<96x32xf32>, vector<96x32xf32>, vector<96x32xf32>, vector<96x32xf32> -> vector<96x160xf32>
    %c0_11 = arith.constant 0 : index
    %c0_12 = arith.constant 0 : index
    %28 = vector.load %arg3[%c0_11, %c0_12] : memref<160x48xf32, #tpu.memory_space<vmem>>, vector<160x48xf32>
    %cst_13 = arith.constant dense<0.000000e+00> : vector<96x48xf32>
    %29 = tpu.matmul %27, %28, %cst_13 {dimension_numbers = #tpu.dot_dimension_numbers<[1], [0], [0], [1], [0, 0, 1, 1], [], []>} : vector<96x160xf32>, vector<160x48xf32>, vector<96x48xf32> -> vector<96x48xf32>
    %30 = vector.shape_cast %29 : vector<96x48xf32> to vector<8x12x48xf32>
    %c0_14 = arith.constant 0 : index
    %c0_15 = arith.constant 0 : index
    %31 = vector.load %arg4[%c0_14, %c0_15] : memref<1x48xf32, #tpu.memory_space<vmem>>, vector<1x48xf32>
    %32 = vector.shape_cast %31 : vector<1x48xf32> to vector<1x1x48xf32>
    %33 = vector.broadcast %32 : vector<1x1x48xf32> to vector<8x12x48xf32>
    %34 = arith.addf %30, %33 : vector<8x12x48xf32>
    %cst_16 = arith.constant 0.000000e+00 : f32
    %35 = vector.broadcast %cst_16 : f32 to vector<8x12x48xf32>
    %36 = arith.maximumf %34, %35 : vector<8x12x48xf32>
    %37 = tpu.iota {dimensions = array<i32: 0>} : vector<12x48xi32>
    %38 = tpu.iota {dimensions = array<i32: 1>} : vector<12x48xi32>
    %false = arith.constant false
    %39 = vector.broadcast %false : i1 to vector<12x48xi1>
    %c0_i32 = arith.constant 0 : i32
    %40 = vector.broadcast %c0_i32 : i32 to vector<12x48xi32>
    %41 = arith.cmpi sge, %38, %40 : vector<12x48xi32>
    %c16_i32 = arith.constant 16 : i32
    %42 = vector.broadcast %c16_i32 : i32 to vector<12x48xi32>
    %43 = arith.cmpi slt, %38, %42 : vector<12x48xi32>
    %44 = arith.andi %41, %43 : vector<12x48xi1>
    %c10_i32 = arith.constant 10 : i32
    %45 = vector.broadcast %c10_i32 : i32 to vector<12x48xi32>
    %46 = arith.cmpi slt, %37, %45 : vector<12x48xi32>
    %47 = arith.andi %44, %46 : vector<12x48xi1>
    %48 = arith.ori %39, %47 : vector<12x48xi1>
    %c16_i32_17 = arith.constant 16 : i32
    %49 = vector.broadcast %c16_i32_17 : i32 to vector<12x48xi32>
    %50 = arith.cmpi sge, %38, %49 : vector<12x48xi32>
    %c32_i32 = arith.constant 32 : i32
    %51 = vector.broadcast %c32_i32 : i32 to vector<12x48xi32>
    %52 = arith.cmpi slt, %38, %51 : vector<12x48xi32>
    %53 = arith.andi %50, %52 : vector<12x48xi1>
    %c11_i32 = arith.constant 11 : i32
    %54 = vector.broadcast %c11_i32 : i32 to vector<12x48xi32>
    %55 = arith.cmpi slt, %37, %54 : vector<12x48xi32>
    %56 = arith.andi %53, %55 : vector<12x48xi1>
    %57 = arith.ori %48, %56 : vector<12x48xi1>
    %c32_i32_18 = arith.constant 32 : i32
    %58 = vector.broadcast %c32_i32_18 : i32 to vector<12x48xi32>
    %59 = arith.cmpi sge, %38, %58 : vector<12x48xi32>
    %c48_i32 = arith.constant 48 : i32
    %60 = vector.broadcast %c48_i32 : i32 to vector<12x48xi32>
    %61 = arith.cmpi slt, %38, %60 : vector<12x48xi32>
    %62 = arith.andi %59, %61 : vector<12x48xi1>
    %c12_i32 = arith.constant 12 : i32
    %63 = vector.broadcast %c12_i32 : i32 to vector<12x48xi32>
    %64 = arith.cmpi slt, %37, %63 : vector<12x48xi32>
    %65 = arith.andi %62, %64 : vector<12x48xi1>
    %66 = arith.ori %57, %65 : vector<12x48xi1>
    %67 = vector.shape_cast %66 : vector<12x48xi1> to vector<1x12x48xi1>
    %cst_19 = arith.constant -1.000000e+30 : f32
    %68 = vector.shape_cast %67 : vector<1x12x48xi1> to vector<1x12x48xi1>
    %69 = vector.broadcast %68 : vector<1x12x48xi1> to vector<8x12x48xi1>
    %70 = vector.broadcast %cst_19 : f32 to vector<8x12x48xf32>
    %71 = arith.select %69, %36, %70 : vector<8x12x48xi1>, vector<8x12x48xf32>
    %cst_20 = arith.constant dense<0xFF800000> : vector<8x48xf32>
    %72 = vector.multi_reduction <maximumf>, %71, %cst_20 [1] : vector<8x12x48xf32> to vector<8x48xf32>
    %c0_21 = arith.constant 0 : index
    %c0_22 = arith.constant 0 : index
    %73 = vector.load %arg5[%c0_21, %c0_22] : memref<48x128xf32, #tpu.memory_space<vmem>>, vector<48x128xf32>
    %cst_23 = arith.constant dense<0.000000e+00> : vector<8x128xf32>
    %74 = tpu.matmul %72, %73, %cst_23 {dimension_numbers = #tpu.dot_dimension_numbers<[1], [0], [0], [1], [0, 0, 1, 1], [], []>} : vector<8x48xf32>, vector<48x128xf32>, vector<8x128xf32> -> vector<8x128xf32>
    %c0_24 = arith.constant 0 : index
    %c0_25 = arith.constant 0 : index
    %75 = vector.load %arg6[%c0_24, %c0_25] : memref<1x128xf32, #tpu.memory_space<vmem>>, vector<1x128xf32>
    %76 = vector.broadcast %75 : vector<1x128xf32> to vector<8x128xf32>
    %77 = arith.addf %74, %76 : vector<8x128xf32>
    %cst_26 = arith.constant dense<0xFF800000> : vector<8xf32>
    %78 = vector.multi_reduction <maximumf>, %77, %cst_26 [1] : vector<8x128xf32> to vector<8xf32>
    %79 = vector.shape_cast %78 : vector<8xf32> to vector<8x1xf32>
    %80 = vector.broadcast %79 : vector<8x1xf32> to vector<8x128xf32>
    %81 = arith.subf %77, %80 : vector<8x128xf32>
    %82 = math.exp %81 : vector<8x128xf32>
    %cst_27 = arith.constant dense<0.000000e+00> : vector<8xf32>
    %83 = vector.multi_reduction <add>, %82, %cst_27 [1] : vector<8x128xf32> to vector<8xf32>
    %84 = vector.shape_cast %83 : vector<8xf32> to vector<8x1xf32>
    %85 = math.log %84 : vector<8x1xf32>
    %86 = vector.broadcast %85 : vector<8x1xf32> to vector<8x128xf32>
    %87 = arith.subf %81, %86 : vector<8x128xf32>
    %c0_28 = arith.constant 0 : index
    %c0_29 = arith.constant 0 : index
    %88 = vector.load %arg7[%c0_28, %c0_29] : memref<8x128xf32, #tpu.memory_space<vmem>>, vector<8x128xf32>
    tpu.vector_store %arg7[%c0_28, %c0_29], %87 {strides = array<i32>} : memref<8x128xf32, #tpu.memory_space<vmem>>, vector<8x128xf32>,
    return
  }
  func.func @transform_0(%arg0: i32) -> (i32, i32) {
    %c0_i32 = arith.constant 0 : i32
    %c0_i32_0 = arith.constant 0 : i32
    return %arg0, %c0_i32 : i32, i32
  }
  func.func @transform_1(%arg0: i32) -> (i32, i32) {
    %c0_i32 = arith.constant 0 : i32
    %c0_i32_0 = arith.constant 0 : i32
    %c0_i32_1 = arith.constant 0 : i32
    return %c0_i32, %c0_i32_0 : i32, i32
  }
  func.func @transform_2(%arg0: i32) -> (i32, i32) {
    %c0_i32 = arith.constant 0 : i32
    %c0_i32_0 = arith.constant 0 : i32
    %c0_i32_1 = arith.constant 0 : i32
    return %c0_i32, %c0_i32_0 : i32, i32
  }
  func.func @transform_3(%arg0: i32) -> (i32, i32) {
    %c0_i32 = arith.constant 0 : i32
    %c0_i32_0 = arith.constant 0 : i32
    %c0_i32_1 = arith.constant 0 : i32
    return %c0_i32, %c0_i32_0 : i32, i32
  }
  func.func @transform_4(%arg0: i32) -> (i32, i32) {
    %c0_i32 = arith.constant 0 : i32
    %c0_i32_0 = arith.constant 0 : i32
    %c0_i32_1 = arith.constant 0 : i32
    return %c0_i32, %c0_i32_0 : i32, i32
  }
  func.func @transform_5(%arg0: i32) -> (i32, i32) {
    %c0_i32 = arith.constant 0 : i32
    %c0_i32_0 = arith.constant 0 : i32
    %c0_i32_1 = arith.constant 0 : i32
    return %c0_i32, %c0_i32_0 : i32, i32
  }
  func.func @transform_6(%arg0: i32) -> (i32, i32) {
    %c0_i32 = arith.constant 0 : i32
    %c0_i32_0 = arith.constant 0 : i32
    return %arg0, %c0_i32 : i32, i32
  }
}

</mosaic_0001>

<llo_original>
// kernel: tpu_custom_call.1
$region0: #{tpu_custom_call.1}
  #allocation0 [shape = 'u32[]', space=smem, size = 0x4, offset = 0x4, fixed_abs, tag = 'smem constant byte address 0x4 - core index']
  #allocation1 [shape = 'u32[144,128]{1,0:T(1,128)}', space=vmem, size = 0x12000, scoped, tag = 'internal scratch']
  %s0 = inlined_call_operand.vmem [shape: s32[64,1], index: 0, kind: input, shape index: {}]
  %s1 = inlined_call_operand.vmem [shape: f32[50,32], index: 1, kind: input, shape index: {}]
  %s2 = inlined_call_operand.vmem [shape: f32[160,48], index: 2, kind: input, shape index: {}]
  %s3 = inlined_call_operand.vmem [shape: f32[1,48], index: 3, kind: input, shape index: {}]
  %s4 = inlined_call_operand.vmem [shape: f32[48,128], index: 4, kind: input, shape index: {}]
  %s5 = inlined_call_operand.vmem [shape: f32[1,128], index: 5, kind: input, shape index: {}]
  %s6 = inlined_call_operand.hbm [shape: f32[8,128], index: 6, kind: output, shape index: {}]
  %s7 = sld [smem:[#allocation0]]
  $region34: #{tpu_custom_call.1} parent=0
    _
  %s9 = ssub.s32 1, %s7
  %s10 = scalar_select 0, %s9, %s7
  $region1: #{tpu_custom_call.1} parent=0
    #allocation2 [shape = 'u8[4096]{0}', space=vmem, size = 0x1000, scoped, tag = 'output window, operand 0, single buffered']
    #allocation3 [shape = 's32[1]{0}', space=sflag, size = 0x4, scoped, tag = 'scoped memory for tpu_custom_call.1']
    %11 = vsyncpa [#allocation3], 0
    // Predicated region
    $region2: #{tpu_custom_call.1} parent=1 // pred_check
      _
    $region3: #{tpu_custom_call.1} parent=1 // pred_check_branch
      %13 = sbr.rel (0) target = $region5
    $region4: #{tpu_custom_call.1} parent=1 // pred_region
      _
    $region5: #{tpu_custom_call.1} parent=1 // pred_fallthru
      _
    // Predicated region
    $region6: #{tpu_custom_call.1} parent=1 // pred_check
      _
    $region7: #{tpu_custom_call.1} parent=1 // pred_check_branch
      %15 = sbr.rel (0) target = $region9
    $region8: #{tpu_custom_call.1} parent=1 // pred_region
      _
    $region9: #{tpu_custom_call.1} parent=1 // pred_fallthru
      _
    // Predicated region
    $region10: #{tpu_custom_call.1} parent=1 // pred_check
      _
    $region11: #{tpu_custom_call.1} parent=1 // pred_check_branch
      %17 = sbr.rel (0) target = $region13
    $region12: #{tpu_custom_call.1} parent=1 // pred_region
      _
    $region13: #{tpu_custom_call.1} parent=1 // pred_fallthru
      _
    // Predicated region
    $region14: #{tpu_custom_call.1} parent=1 // pred_check
      _
    $region15: #{tpu_custom_call.1} parent=1 // pred_check_branch
      %19 = sbr.rel (0) target = $region17
    $region16: #{tpu_custom_call.1} parent=1 // pred_region
      _
    $region17: #{tpu_custom_call.1} parent=1 // pred_fallthru
      _
    // Predicated region
    $region18: #{tpu_custom_call.1} parent=1 // pred_check
      _
    $region19: #{tpu_custom_call.1} parent=1 // pred_check_branch
      %21 = sbr.rel (0) target = $region21
    $region20: #{tpu_custom_call.1} parent=1 // pred_region
      _
    $region21: #{tpu_custom_call.1} parent=1 // pred_fallthru
      _
    // Predicated region
    $region22: #{tpu_custom_call.1} parent=1 // pred_check
      _
    $region23: #{tpu_custom_call.1} parent=1 // pred_check_branch
      %23 = sbr.rel (0) target = $region25
    $region24: #{tpu_custom_call.1} parent=1 // pred_region
      _
    $region25: #{tpu_custom_call.1} parent=1 // pred_fallthru
      _
    %v24 = vld [vmem:[%s0] sm:$0xff]
    %v25 = vld [vmem:[%s0 + $0x8] sm:$0xff]
    %v26 = vld [vmem:[%s0 + $0x10] sm:$0xff]
    %v27 = vld [vmem:[%s0 + $0x18] sm:$0xff]
    %v28 = vld [vmem:[%s0 + $0x20] sm:$0xff]
    %v29 = vld [vmem:[%s0 + $0x28] sm:$0xff]
    %v30 = vld [vmem:[%s0 + $0x30] sm:$0xff]
    %v31 = vld [vmem:[%s0 + $0x38] sm:$0xff]
    %v32 = vlaneseq
    %v33 = vand.u32 %v32, 127
    %34 = vset.pattern.permute.xlu0 0
    %35 = vperm.xlu0 %34, %v24
    %v36 = vpop.permute.xlu0 %35
    %37 = vset.pattern.permute.xlu0 0
    %38 = vperm.xlu0 %37, %v25
    %v39 = vpop.permute.xlu0 %38
    %40 = vset.pattern.permute.xlu0 0
    %41 = vperm.xlu0 %40, %v26
    %v42 = vpop.permute.xlu0 %41
    %43 = vset.pattern.permute.xlu0 0
    %44 = vperm.xlu0 %43, %v27
    %v45 = vpop.permute.xlu0 %44
    %46 = vset.pattern.permute.xlu0 0
    %47 = vperm.xlu0 %46, %v28
    %v48 = vpop.permute.xlu0 %47
    %49 = vset.pattern.permute.xlu0 0
    %50 = vperm.xlu0 %49, %v29
    %v51 = vpop.permute.xlu0 %50
    %52 = vset.pattern.permute.xlu0 0
    %53 = vperm.xlu0 %52, %v30
    %v54 = vpop.permute.xlu0 %53
    %55 = vset.pattern.permute.xlu0 0
    %56 = vperm.xlu0 %55, %v31
    %v57 = vpop.permute.xlu0 %56
    %vm58 = vcmp.eq.s32.totalorder %v33, %v36
    %vm59 = vcmp.eq.s32.totalorder %v33, %v39
    %vm60 = vcmp.eq.s32.totalorder %v33, %v42
    %vm61 = vcmp.eq.s32.totalorder %v33, %v45
    %vm62 = vcmp.eq.s32.totalorder %v33, %v48
    %vm63 = vcmp.eq.s32.totalorder %v33, %v51
    %vm64 = vcmp.eq.s32.totalorder %v33, %v54
    %vm65 = vcmp.eq.s32.totalorder %v33, %v57
    %v66 = vsel %vm58, 1, 0
    %v67 = vsel %vm59, 1, 0
    %v68 = vsel %vm60, 1, 0
    %v69 = vsel %vm61, 1, 0
    %v70 = vsel %vm62, 1, 0
    %v71 = vsel %vm63, 1, 0
    %v72 = vsel %vm64, 1, 0
    %v73 = vsel %vm65, 1, 0
    %v74 = vcvt.s32.f32 %v66
    %v75 = vcvt.s32.f32 %v67
    %v76 = vcvt.s32.f32 %v68
    %v77 = vcvt.s32.f32 %v69
    %v78 = vcvt.s32.f32 %v70
    %v79 = vcvt.s32.f32 %v71
    %v80 = vcvt.s32.f32 %v72
    %v81 = vcvt.s32.f32 %v73
    %v82 = vld [vmem:[%s1] sm:$0xff]
    %v83 = vld [vmem:[%s1 + $0x8] sm:$0xff]
    %v84 = vld [vmem:[%s1 + $0x10] sm:$0xff]
    %v85 = vld [vmem:[%s1 + $0x18] sm:$0xff]
    %v86 = vld [vmem:[%s1 + $0x20] sm:$0xff]
    %v87 = vld [vmem:[%s1 + $0x28] sm:$0xff]
    %v88 = vld [vmem:[%s1 + $0x30] sm:$0x3]
    %vm89 = vcmask 408576
    %v91 = vsel %vm89, %v74, 0
    %v94 = vsel %vm89, %v75, 0
    %v97 = vsel %vm89, %v76, 0
    %v100 = vsel %vm89, %v77, 0
    %v103 = vsel %vm89, %v78, 0
    %v106 = vsel %vm89, %v79, 0
    %v109 = vsel %vm89, %v80, 0
    %v112 = vsel %vm89, %v81, 0
    %vm114 = vcmask 1041408
    %v116 = vsel %vm114, %v88, 0
    %118 = vmatprep.subr.mxu0 0.0
    %119 = vmatpush1.msra.mxu0 0.0
    %120 = vmatprep.subr.mxu0 0.0
    %121 = vmatpush1.msra.mxu0 0.0
    %122 = vmatprep.subr.mxu0 0.0
    %123 = vmatpush1.msra.mxu0 0.0
    %124 = vmatprep.subr.mxu0 0.0
    %125 = vmatpush1.msra.mxu0 0.0
    %126 = vmatprep.subr.mxu0 0.0
    %127 = vmatpush1.msra.mxu0 0.0
    %128 = vmatprep.subr.mxu0 0.0
    %129 = vmatpush1.msra.mxu0 0.0
    %130 = vmatprep.subr.mxu0 0.0
    %131 = vmatpush1.msra.mxu0 0.0
    %132 = vmatprep.subr.mxu0 0.0
    %133 = vmatpush1.msra.mxu0 0.0
    %134 = vmatprep.subr.mxu0 0.0
    %135 = vmatpush1.msra.mxu0 0.0
    %136 = vmatprep.subr.mxu0 0.0
    %137 = vmatpush1.msra.mxu0 %v116
    %138 = vmatprep.subr.mxu0 0.0
    %139 = vmatpush1.msra.mxu0 %v87
    %140 = vmatprep.subr.mxu0 0.0
    %141 = vmatpush1.msra.mxu0 %v86
    %142 = vmatprep.subr.mxu0 0.0
    %143 = vmatpush1.msra.mxu0 %v85
    %144 = vmatprep.subr.mxu0 0.0
    %145 = vmatpush1.msra.mxu0 %v84
    %146 = vmatprep.subr.mxu0 0.0
    %147 = vmatpush1.msra.mxu0 %v83
    %148 = vmatprep.subr.mxu0 0.0
    %149 = vmatpush1.msra.mxu0 %v82
    %150 = vmatprep.subr.mxu0 0.0
    %151 = vmatpush2.msra.mxu0 0.0
    %152 = vmatprep.subr.mxu0 0.0
    %153 = vmatpush2.msra.mxu0 0.0
    %154 = vmatprep.subr.mxu0 0.0
    %155 = vmatpush2.msra.mxu0 0.0
    %156 = vmatprep.subr.mxu0 0.0
    %157 = vmatpush2.msra.mxu0 0.0
    %158 = vmatprep.subr.mxu0 0.0
    %159 = vmatpush2.msra.mxu0 0.0
    %160 = vmatprep.subr.mxu0 0.0
    %161 = vmatpush2.msra.mxu0 0.0
    %162 = vmatprep.subr.mxu0 0.0
    %163 = vmatpush2.msra.mxu0 0.0
    %164 = vmatprep.subr.mxu0 0.0
    %165 = vmatpush2.msra.mxu0 0.0
    %166 = vmatprep.subr.mxu0 0.0
    %167 = vmatpush2.msra.mxu0 0.0
    %168 = vmatprep.subr.mxu0 0.0
    %169 = vmatpush2.msra.mxu0 0.0
    %170 = vmatprep.subr.mxu0 0.0
    %171 = vmatpush2.msra.mxu0 0.0
    %172 = vmatprep.subr.mxu0 0.0
    %173 = vmatpush2.msra.mxu0 0.0
    %174 = vmatprep.subr.mxu0 0.0
    %175 = vmatpush2.msra.mxu0 0.0
    %176 = vmatprep.subr.mxu0 0.0
    %177 = vmatpush2.msra.mxu0 0.0
    %178 = vmatprep.subr.mxu0 0.0
    %179 = vmatpush2.msra.mxu0 0.0
    %180 = vmatprep.subr.mxu0 0.0
    %181 = vmatpush2.msra.mxu0 0.0
    %182 = vmatprep.mubr.f32.mxu0 0.0
    %183 = vmatmul.mubr.f32.gmra.mxu0 %v91
    %v184 = vpop.f32.mrf.mxu0
    %v185 = vadd.f32 0.0, %v184
    %v186 = vpop.f32.mrf.mxu0
    %187 = vmatprep.mubr.f32.mxu0 0.0
    %188 = vmatmul.mubr.f32.gmra.mxu0 %v94
    %v189 = vpop.f32.mrf.mxu0
    %v190 = vadd.f32 0.0, %v189
    %v191 = vpop.f32.mrf.mxu0
    %192 = vmatprep.mubr.f32.mxu0 0.0
    %193 = vmatmul.mubr.f32.gmra.mxu0 %v97
    %v194 = vpop.f32.mrf.mxu0
    %v195 = vadd.f32 0.0, %v194
    %v196 = vpop.f32.mrf.mxu0
    %197 = vmatprep.mubr.f32.mxu0 0.0
    %198 = vmatmul.mubr.f32.gmra.mxu0 %v100
    %v199 = vpop.f32.mrf.mxu0
    %v200 = vadd.f32 0.0, %v199
    %v201 = vpop.f32.mrf.mxu0
    %202 = vmatprep.mubr.f32.mxu0 0.0
    %203 = vmatmul.mubr.f32.gmra.mxu0 %v103
    %v204 = vpop.f32.mrf.mxu0
    %v205 = vadd.f32 0.0, %v204
    %v206 = vpop.f32.mrf.mxu0
    %207 = vmatprep.mubr.f32.mxu0 0.0
    %208 = vmatmul.mubr.f32.gmra.mxu0 %v106
    %v209 = vpop.f32.mrf.mxu0
    %v210 = vadd.f32 0.0, %v209
    %v211 = vpop.f32.mrf.mxu0
    %212 = vmatprep.mubr.f32.mxu0 0.0
    %213 = vmatmul.mubr.f32.gmra.mxu0 %v109
    %v214 = vpop.f32.mrf.mxu0
    %v215 = vadd.f32 0.0, %v214
    %v216 = vpop.f32.mrf.mxu0
    %217 = vmatprep.mubr.f32.mxu0 0.0
    %218 = vmatmul.mubr.f32.gmra.mxu0 %v112
    %v219 = vpop.f32.mrf.mxu0
    %v220 = vadd.f32 0.0, %v219
    %v221 = vpop.f32.mrf.mxu0
    %222 = vdwg.mxu0
    %v231 = vrot.slane %v185, 4
    %v232 = vrot.slane %v190, 4
    %v233 = vrot.slane %v195, 4
    %v234 = vrot.slane %v200, 4
    %v235 = vrot.slane %v205, 4
    %v236 = vrot.slane %v210, 4
    %v237 = vrot.slane %v215, 4
    %v238 = vrot.slane %v220, 4
    %vm247 = vcmask 1043456
    %v248 = vsel %vm247, 0.0, %v231
    %v249 = vsel %vm247, 0.0, %v232
    %v250 = vsel %vm247, 0.0, %v233
    %v251 = vsel %vm247, 0.0, %v234
    %v252 = vsel %vm247, 0.0, %v235
    %v253 = vsel %vm247, 0.0, %v236
    %v254 = vsel %vm247, 0.0, %v237
    %v255 = vsel %vm247, 0.0, %v238
    %v264 = vcombine.high %v248, %v248
    %v265 = vcombine.high %v249, %v249
    %v266 = vcombine.high %v250, %v250
    %v267 = vcombine.high %v251, %v251
    %v268 = vcombine.high %v252, %v252
    %v269 = vcombine.high %v253, %v253
    %v270 = vcombine.high %v254, %v254
    %v271 = vcombine.high %v255, %v255
    %v272 = vrot.slane %v185, 5
    %v273 = vrot.slane %v190, 5
    %v274 = vrot.slane %v195, 5
    %v275 = vrot.slane %v200, 5
    %v276 = vrot.slane %v205, 5
    %v277 = vrot.slane %v210, 5
    %v278 = vrot.slane %v215, 5
    %v279 = vrot.slane %v220, 5
    %vm288 = vcmask 1042432
    %v289 = vsel %vm288, 0.0, %v272
    %v290 = vsel %vm288, 0.0, %v273
    %v291 = vsel %vm288, 0.0, %v274
    %v292 = vsel %vm288, 0.0, %v275
    %v293 = vsel %vm288, 0.0, %v276
    %v294 = vsel %vm288, 0.0, %v277
    %v295 = vsel %vm288, 0.0, %v278
    %v296 = vsel %vm288, 0.0, %v279
    %v297 = vsel %vm288, %v272, 0.0
    %v298 = vsel %vm288, %v273, 0.0
    %v299 = vsel %vm288, %v274, 0.0
    %v300 = vsel %vm288, %v275, 0.0
    %v301 = vsel %vm288, %v276, 0.0
    %v302 = vsel %vm288, %v277, 0.0
    %v303 = vsel %vm288, %v278, 0.0
    %v304 = vsel %vm288, %v279, 0.0
    %v321 = vcombine.high %v289, %v289
    %v322 = vcombine.high %v290, %v290
    %v323 = vcombine.high %v291, %v291
    %v324 = vcombine.high %v292, %v292
    %v325 = vcombine.high %v293, %v293
    %v326 = vcombine.high %v294, %v294
    %v327 = vcombine.high %v295, %v295
    %v328 = vcombine.high %v296, %v296
    %v329 = vrot.slane %v185, 6
    %v330 = vrot.slane %v190, 6
    %v331 = vrot.slane %v195, 6
    %v332 = vrot.slane %v200, 6
    %v333 = vrot.slane %v205, 6
    %v334 = vrot.slane %v210, 6
    %v335 = vrot.slane %v215, 6
    %v336 = vrot.slane %v220, 6
    %v345 = vsel %vm114, 0.0, %v329
    %v346 = vsel %vm114, 0.0, %v330
    %v347 = vsel %vm114, 0.0, %v331
    %v348 = vsel %vm114, 0.0, %v332
    %v349 = vsel %vm114, 0.0, %v333
    %v350 = vsel %vm114, 0.0, %v334
    %v351 = vsel %vm114, 0.0, %v335
    %v352 = vsel %vm114, 0.0, %v336
    %v353 = vsel %vm114, %v329, 0.0
    %v354 = vsel %vm114, %v330, 0.0
    %v355 = vsel %vm114, %v331, 0.0
    %v356 = vsel %vm114, %v332, 0.0
    %v357 = vsel %vm114, %v333, 0.0
    %v358 = vsel %vm114, %v334, 0.0
    %v359 = vsel %vm114, %v335, 0.0
    %v360 = vsel %vm114, %v336, 0.0
    %v377 = vcombine.high %v345, %v345
    %v378 = vcombine.high %v346, %v346
    %v379 = vcombine.high %v347, %v347
    %v380 = vcombine.high %v348, %v348
    %v381 = vcombine.high %v349, %v349
    %v382 = vcombine.high %v350, %v350
    %v383 = vcombine.high %v351, %v351
    %v384 = vcombine.high %v352, %v352
    %v385 = vrot.slane %v185, 7
    %v386 = vrot.slane %v190, 7
    %v387 = vrot.slane %v195, 7
    %v388 = vrot.slane %v200, 7
    %v389 = vrot.slane %v205, 7
    %v390 = vrot.slane %v210, 7
    %v391 = vrot.slane %v215, 7
    %v392 = vrot.slane %v220, 7
    %vm401 = vcmask 1040384
    %v402 = vsel %vm401, 0.0, %v385
    %v403 = vsel %vm401, 0.0, %v386
    %v404 = vsel %vm401, 0.0, %v387
    %v405 = vsel %vm401, 0.0, %v388
    %v406 = vsel %vm401, 0.0, %v389
    %v407 = vsel %vm401, 0.0, %v390
    %v408 = vsel %vm401, 0.0, %v391
    %v409 = vsel %vm401, 0.0, %v392
    %v410 = vsel %vm401, %v385, 0.0
    %v411 = vsel %vm401, %v386, 0.0
    %v412 = vsel %vm401, %v387, 0.0
    %v413 = vsel %vm401, %v388, 0.0
    %v414 = vsel %vm401, %v389, 0.0
    %v415 = vsel %vm401, %v390, 0.0
    %v416 = vsel %vm401, %v391, 0.0
    %v417 = vsel %vm401, %v392, 0.0
    %v434 = vcombine.high %v402, %v402
    %v435 = vcombine.high %v403, %v403
    %v436 = vcombine.high %v404, %v404
    %v437 = vcombine.high %v405, %v405
    %v438 = vcombine.high %v406, %v406
    %v439 = vcombine.high %v407, %v407
    %v440 = vcombine.high %v408, %v408
    %v441 = vcombine.high %v409, %v409
    %v443 = vcombine.high %v185, %v185
    %v444 = vcombine.high %v190, %v190
    %v445 = vcombine.high %v195, %v195
    %v446 = vcombine.high %v200, %v200
    %v447 = vcombine.high %v205, %v205
    %v448 = vcombine.high %v210, %v210
    %v449 = vcombine.high %v215, %v215
    %v450 = vcombine.high %v220, %v220
    %v451 = vcombine.low %v248, %v264
    %v452 = vcombine.low %v231, %v249
    %v453 = vcombine.low %v265, %v232
    %v454 = vcombine.low %v250, %v266
    %v455 = vcombine.low %v233, %v251
    %v456 = vcombine.low %v267, %v234
    %v457 = vcombine.low %v252, %v268
    %v458 = vcombine.low %v235, %v253
    %v459 = vcombine.low %v269, %v236
    %v460 = vcombine.low %v254, %v270
    %v461 = vcombine.low %v237, %v255
    %v462 = vcombine.low %v271, %v238
    %v475 = vcombine.low %v289, %v321
    %v476 = vcombine.low %v297, %v290
    %v477 = vcombine.low %v322, %v298
    %v478 = vcombine.low %v291, %v323
    %v479 = vcombine.low %v299, %v292
    %v480 = vcombine.low %v324, %v300
    %v481 = vcombine.low %v293, %v325
    %v482 = vcombine.low %v301, %v294
    %v483 = vcombine.low %v326, %v302
    %v484 = vcombine.low %v295, %v327
    %v485 = vcombine.low %v303, %v296
    %v486 = vcombine.low %v328, %v304
    %487 = vrot.lane.b32.xlu0 %v475, 32
    %v488 = vpop.permute.xlu0 %487
    %489 = vrot.lane.b32.xlu0 %v476, 32
    %v490 = vpop.permute.xlu0 %489
    %491 = vrot.lane.b32.xlu0 %v477, 32
    %v492 = vpop.permute.xlu0 %491
    %493 = vrot.lane.b32.xlu0 %v478, 32
    %v494 = vpop.permute.xlu0 %493
    %495 = vrot.lane.b32.xlu0 %v479, 32
    %v496 = vpop.permute.xlu0 %495
    %497 = vrot.lane.b32.xlu0 %v480, 32
    %v498 = vpop.permute.xlu0 %497
    %499 = vrot.lane.b32.xlu0 %v481, 32
    %v500 = vpop.permute.xlu0 %499
    %501 = vrot.lane.b32.xlu0 %v482, 32
    %v502 = vpop.permute.xlu0 %501
    %503 = vrot.lane.b32.xlu0 %v483, 32
    %v504 = vpop.permute.xlu0 %503
    %505 = vrot.lane.b32.xlu0 %v484, 32
    %v506 = vpop.permute.xlu0 %505
    %507 = vrot.lane.b32.xlu0 %v485, 32
    %v508 = vpop.permute.xlu0 %507
    %509 = vrot.lane.b32.xlu0 %v486, 32
    %v510 = vpop.permute.xlu0 %509
    %v523 = vcombine.low %v345, %v377
    %v524 = vcombine.low %v353, %v346
    %v525 = vcombine.low %v378, %v354
    %v526 = vcombine.low %v347, %v379
    %v527 = vcombine.low %v355, %v348
    %v528 = vcombine.low %v380, %v356
    %v529 = vcombine.low %v349, %v381
    %v530 = vcombine.low %v357, %v350
    %v531 = vcombine.low %v382, %v358
    %v532 = vcombine.low %v351, %v383
    %v533 = vcombine.low %v359, %v352
    %v534 = vcombine.low %v384, %v360
    %535 = vrot.lane.b32.xlu0 %v523, 64
    %v536 = vpop.permute.xlu0 %535
    %537 = vrot.lane.b32.xlu0 %v524, 64
    %v538 = vpop.permute.xlu0 %537
    %539 = vrot.lane.b32.xlu0 %v525, 64
    %v540 = vpop.permute.xlu0 %539
    %541 = vrot.lane.b32.xlu0 %v526, 64
    %v542 = vpop.permute.xlu0 %541
    %543 = vrot.lane.b32.xlu0 %v527, 64
    %v544 = vpop.permute.xlu0 %543
    %545 = vrot.lane.b32.xlu0 %v528, 64
    %v546 = vpop.permute.xlu0 %545
    %547 = vrot.lane.b32.xlu0 %v529, 64
    %v548 = vpop.permute.xlu0 %547
    %549 = vrot.lane.b32.xlu0 %v530, 64
    %v550 = vpop.permute.xlu0 %549
    %551 = vrot.lane.b32.xlu0 %v531, 64
    %v552 = vpop.permute.xlu0 %551
    %553 = vrot.lane.b32.xlu0 %v532, 64
    %v554 = vpop.permute.xlu0 %553
    %555 = vrot.lane.b32.xlu0 %v533, 64
    %v556 = vpop.permute.xlu0 %555
    %557 = vrot.lane.b32.xlu0 %v534, 64
    %v558 = vpop.permute.xlu0 %557
    %v571 = vcombine.low %v402, %v434
    %v572 = vcombine.low %v410, %v403
    %v573 = vcombine.low %v435, %v411
    %v574 = vcombine.low %v404, %v436
    %v575 = vcombine.low %v412, %v405
    %v576 = vcombine.low %v437, %v413
    %v577 = vcombine.low %v406, %v438
    %v578 = vcombine.low %v414, %v407
    %v579 = vcombine.low %v439, %v415
    %v580 = vcombine.low %v408, %v440
    %v581 = vcombine.low %v416, %v409
    %v582 = vcombine.low %v441, %v417
    %583 = vrot.lane.b32.xlu0 %v571, 96
    %v584 = vpop.permute.xlu0 %583
    %585 = vrot.lane.b32.xlu0 %v572, 96
    %v586 = vpop.permute.xlu0 %585
    %587 = vrot.lane.b32.xlu0 %v573, 96
    %v588 = vpop.permute.xlu0 %587
    %589 = vrot.lane.b32.xlu0 %v574, 96
    %v590 = vpop.permute.xlu0 %589
    %591 = vrot.lane.b32.xlu0 %v575, 96
    %v592 = vpop.permute.xlu0 %591
    %593 = vrot.lane.b32.xlu0 %v576, 96
    %v594 = vpop.permute.xlu0 %593
    %595 = vrot.lane.b32.xlu0 %v577, 96
    %v596 = vpop.permute.xlu0 %595
    %597 = vrot.lane.b32.xlu0 %v578, 96
    %v598 = vpop.permute.xlu0 %597
    %599 = vrot.lane.b32.xlu0 %v579, 96
    %v600 = vpop.permute.xlu0 %599
    %601 = vrot.lane.b32.xlu0 %v580, 96
    %v602 = vpop.permute.xlu0 %601
    %603 = vrot.lane.b32.xlu0 %v581, 96
    %v604 = vpop.permute.xlu0 %603
    %605 = vrot.lane.b32.xlu0 %v582, 96
    %v606 = vpop.permute.xlu0 %605
    %v619 = vcombine.low %v185, %v443
    %v620 = vcombine.low 0.0, %v190
    %v621 = vcombine.low %v444, 0.0
    %v622 = vcombine.low %v195, %v445
    %v623 = vcombine.low 0.0, %v200
    %v624 = vcombine.low %v446, 0.0
    %v625 = vcombine.low %v205, %v447
    %v626 = vcombine.low 0.0, %v210
    %v627 = vcombine.low %v448, 0.0
    %v628 = vcombine.low %v215, %v449
    %v629 = vcombine.low 0.0, %v220
    %v630 = vcombine.low %v450, 0.0
    %vm631 = vcmask 261120
    %v632 = vsel %vm631, %v451, %v488
    %v633 = vsel %vm631, %v452, %v490
    %v634 = vsel %vm631, %v453, %v492
    %v635 = vsel %vm631, %v454, %v494
    %v636 = vsel %vm631, %v455, %v496
    %v637 = vsel %vm631, %v456, %v498
    %v638 = vsel %vm631, %v457, %v500
    %v639 = vsel %vm631, %v458, %v502
    %v640 = vsel %vm631, %v459, %v504
    %v641 = vsel %vm631, %v460, %v506
    %v642 = vsel %vm631, %v461, %v508
    %v643 = vsel %vm631, %v462, %v510
    %vm644 = vcmask 523264
    %v645 = vsel %vm644, %v632, %v536
    %v646 = vsel %vm644, %v633, %v538
    %v647 = vsel %vm644, %v634, %v540
    %v648 = vsel %vm644, %v635, %v542
    %v649 = vsel %vm644, %v636, %v544
    %v650 = vsel %vm644, %v637, %v546
    %v651 = vsel %vm644, %v638, %v548
    %v652 = vsel %vm644, %v639, %v550
    %v653 = vsel %vm644, %v640, %v552
    %v654 = vsel %vm644, %v641, %v554
    %v655 = vsel %vm644, %v642, %v556
    %v656 = vsel %vm644, %v643, %v558
    %vm657 = vcmask 785408
    %v658 = vsel %vm657, %v645, %v584
    %v659 = vsel %vm657, %v646, %v586
    %v660 = vsel %vm657, %v647, %v588
    %v661 = vsel %vm657, %v648, %v590
    %v662 = vsel %vm657, %v649, %v592
    %v663 = vsel %vm657, %v650, %v594
    %v664 = vsel %vm657, %v651, %v596
    %v665 = vsel %vm657, %v652, %v598
    %v666 = vsel %vm657, %v653, %v600
    %v667 = vsel %vm657, %v654, %v602
    %v668 = vsel %vm657, %v655, %v604
    %v669 = vsel %vm657, %v656, %v606
    %v670 = vld [vmem:[%s2] sm:$0xff]
    %v671 = vld [vmem:[%s2 + $0x8] sm:$0xff]
    %v672 = vld [vmem:[%s2 + $0x10] sm:$0xff]
    %v673 = vld [vmem:[%s2 + $0x18] sm:$0xff]
    %v674 = vld [vmem:[%s2 + $0x20] sm:$0xff]
    %v675 = vld [vmem:[%s2 + $0x28] sm:$0xff]
    %v676 = vld [vmem:[%s2 + $0x30] sm:$0xff]
    %v677 = vld [vmem:[%s2 + $0x38] sm:$0xff]
    %v678 = vld [vmem:[%s2 + $0x40] sm:$0xff]
    %v679 = vld [vmem:[%s2 + $0x48] sm:$0xff]
    %v680 = vld [vmem:[%s2 + $0x50] sm:$0xff]
    %v681 = vld [vmem:[%s2 + $0x58] sm:$0xff]
    %v682 = vld [vmem:[%s2 + $0x60] sm:$0xff]
    %v683 = vld [vmem:[%s2 + $0x68] sm:$0xff]
    %v684 = vld [vmem:[%s2 + $0x70] sm:$0xff]
    %v685 = vld [vmem:[%s2 + $0x78] sm:$0xff]
    %v686 = vld [vmem:[%s2 + $0x80] sm:$0xff]
    %v687 = vld [vmem:[%s2 + $0x88] sm:$0xff]
    %v688 = vld [vmem:[%s2 + $0x90] sm:$0xff]
    %v689 = vld [vmem:[%s2 + $0x98] sm:$0xff]
    %v690 = vsel %vm631, %v619, 0
    %v692 = vsel %vm631, %v620, 0
    %v694 = vsel %vm631, %v621, 0
    %v696 = vsel %vm631, %v622, 0
    %v698 = vsel %vm631, %v623, 0
    %v700 = vsel %vm631, %v624, 0
    %v702 = vsel %vm631, %v625, 0
    %v704 = vsel %vm631, %v626, 0
    %v706 = vsel %vm631, %v627, 0
    %v708 = vsel %vm631, %v628, 0
    %v710 = vsel %vm631, %v629, 0
    %v712 = vsel %vm631, %v630, 0
    %714 = vmatprep.subr.mxu0 0.0
    %715 = vmatpush1.msra.mxu0 %v685
    %716 = vmatprep.subr.mxu0 0.0
    %717 = vmatpush1.msra.mxu0 %v684
    %718 = vmatprep.subr.mxu0 0.0
    %719 = vmatpush1.msra.mxu0 %v683
    %720 = vmatprep.subr.mxu0 0.0
    %721 = vmatpush1.msra.mxu0 %v682
    %722 = vmatprep.subr.mxu0 0.0
    %723 = vmatpush1.msra.mxu0 %v681
    %724 = vmatprep.subr.mxu0 0.0
    %725 = vmatpush1.msra.mxu0 %v680
    %726 = vmatprep.subr.mxu0 0.0
    %727 = vmatpush1.msra.mxu0 %v679
    %728 = vmatprep.subr.mxu0 0.0
    %729 = vmatpush1.msra.mxu0 %v678
    %730 = vmatprep.subr.mxu0 0.0
    %731 = vmatpush1.msra.mxu0 %v677
    %732 = vmatprep.subr.mxu0 0.0
    %733 = vmatpush1.msra.mxu0 %v676
    %734 = vmatprep.subr.mxu0 0.0
    %735 = vmatpush1.msra.mxu0 %v675
    %736 = vmatprep.subr.mxu0 0.0
    %737 = vmatpush1.msra.mxu0 %v674
    %738 = vmatprep.subr.mxu0 0.0
    %739 = vmatpush1.msra.mxu0 %v673
    %740 = vmatprep.subr.mxu0 0.0
    %741 = vmatpush1.msra.mxu0 %v672
    %742 = vmatprep.subr.mxu0 0.0
    %743 = vmatpush1.msra.mxu0 %v671
    %744 = vmatprep.subr.mxu0 0.0
    %745 = vmatpush1.msra.mxu0 %v670
    %746 = vmatprep.subr.mxu0 0.0
    %747 = vmatpush2.msra.mxu0 0.0
    %748 = vmatprep.subr.mxu0 0.0
    %749 = vmatpush2.msra.mxu0 0.0
    %750 = vmatprep.subr.mxu0 0.0
    %751 = vmatpush2.msra.mxu0 0.0
    %752 = vmatprep.subr.mxu0 0.0
    %753 = vmatpush2.msra.mxu0 0.0
    %754 = vmatprep.subr.mxu0 0.0
    %755 = vmatpush2.msra.mxu0 0.0
    %756 = vmatprep.subr.mxu0 0.0
    %757 = vmatpush2.msra.mxu0 0.0
    %758 = vmatprep.subr.mxu0 0.0
    %759 = vmatpush2.msra.mxu0 0.0
    %760 = vmatprep.subr.mxu0 0.0
    %761 = vmatpush2.msra.mxu0 0.0
    %762 = vmatprep.subr.mxu0 0.0
    %763 = vmatpush2.msra.mxu0 0.0
    %764 = vmatprep.subr.mxu0 0.0
    %765 = vmatpush2.msra.mxu0 0.0
    %766 = vmatprep.subr.mxu0 0.0
    %767 = vmatpush2.msra.mxu0 0.0
    %768 = vmatprep.subr.mxu0 0.0
    %769 = vmatpush2.msra.mxu0 0.0
    %770 = vmatprep.subr.mxu0 0.0
    %771 = vmatpush2.msra.mxu0 %v689
    %772 = vmatprep.subr.mxu0 0.0
    %773 = vmatpush2.msra.mxu0 %v688
    %774 = vmatprep.subr.mxu0 0.0
    %775 = vmatpush2.msra.mxu0 %v687
    %776 = vmatprep.subr.mxu0 0.0
    %777 = vmatpush2.msra.mxu0 %v686
    %778 = vmatprep.mubr.f32.mxu0 %v690
    %779 = vmatmul.mubr.f32.gmra.mxu0 %v658
    %v780 = vpop.f32.mrf.mxu0
    %v781 = vadd.f32 0.0, %v780
    %v782 = vpop.f32.mrf.mxu0
    %783 = vmatprep.mubr.f32.mxu0 %v692
    %784 = vmatmul.mubr.f32.gmra.mxu0 %v659
    %v785 = vpop.f32.mrf.mxu0
    %v786 = vadd.f32 0.0, %v785
    %v787 = vpop.f32.mrf.mxu0
    %788 = vmatprep.mubr.f32.mxu0 %v694
    %789 = vmatmul.mubr.f32.gmra.mxu0 %v660
    %v790 = vpop.f32.mrf.mxu0
    %v791 = vadd.f32 0.0, %v790
    %v792 = vpop.f32.mrf.mxu0
    %793 = vmatprep.mubr.f32.mxu0 %v696
    %794 = vmatmul.mubr.f32.gmra.mxu0 %v661
    %v795 = vpop.f32.mrf.mxu0
    %v796 = vadd.f32 0.0, %v795
    %v797 = vpop.f32.mrf.mxu0
    %798 = vmatprep.mubr.f32.mxu0 %v698
    %799 = vmatmul.mubr.f32.gmra.mxu0 %v662
    %v800 = vpop.f32.mrf.mxu0
    %v801 = vadd.f32 0.0, %v800
    %v802 = vpop.f32.mrf.mxu0
    %803 = vmatprep.mubr.f32.mxu0 %v700
    %804 = vmatmul.mubr.f32.gmra.mxu0 %v663
    %v805 = vpop.f32.mrf.mxu0
    %v806 = vadd.f32 0.0, %v805
    %v807 = vpop.f32.mrf.mxu0
    %808 = vmatprep.mubr.f32.mxu0 %v702
    %809 = vmatmul.mubr.f32.gmra.mxu0 %v664
    %v810 = vpop.f32.mrf.mxu0
    %v811 = vadd.f32 0.0, %v810
    %v812 = vpop.f32.mrf.mxu0
    %813 = vmatprep.mubr.f32.mxu0 %v704
    %814 = vmatmul.mubr.f32.gmra.mxu0 %v665
    %v815 = vpop.f32.mrf.mxu0
    %v816 = vadd.f32 0.0, %v815
    %v817 = vpop.f32.mrf.mxu0
    %818 = vmatprep.mubr.f32.mxu0 %v706
    %819 = vmatmul.mubr.f32.gmra.mxu0 %v666
    %v820 = vpop.f32.mrf.mxu0
    %v821 = vadd.f32 0.0, %v820
    %v822 = vpop.f32.mrf.mxu0
    %823 = vmatprep.mubr.f32.mxu0 %v708
    %824 = vmatmul.mubr.f32.gmra.mxu0 %v667
    %v825 = vpop.f32.mrf.mxu0
    %v826 = vadd.f32 0.0, %v825
    %v827 = vpop.f32.mrf.mxu0
    %828 = vmatprep.mubr.f32.mxu0 %v710
    %829 = vmatmul.mubr.f32.gmra.mxu0 %v668
    %v830 = vpop.f32.mrf.mxu0
    %v831 = vadd.f32 0.0, %v830
    %v832 = vpop.f32.mrf.mxu0
    %833 = vmatprep.mubr.f32.mxu0 %v712
    %834 = vmatmul.mubr.f32.gmra.mxu0 %v669
    %v835 = vpop.f32.mrf.mxu0
    %v836 = vadd.f32 0.0, %v835
    %v837 = vpop.f32.mrf.mxu0
    %838 = vdwg.mxu0
    %v851 = vcombine.high %v781, %v781
    %v852 = vcombine.high %v786, %v786
    %v853 = vcombine.high %v791, %v791
    %v854 = vcombine.high %v796, %v796
    %v855 = vcombine.high %v801, %v801
    %v856 = vcombine.high %v806, %v806
    %v857 = vcombine.high %v811, %v811
    %v858 = vcombine.high %v816, %v816
    %v859 = vcombine.high %v821, %v821
    %v860 = vcombine.high %v826, %v826
    %v861 = vcombine.high %v831, %v831
    %v862 = vcombine.high %v836, %v836
    %v875 = vld [vmem:[%s3] sm:$0x1]
    %v877 = vlaneseq
    %v878 = vshrl.u32 %v877, 7
    %v879 = vsub.s32 0, %v878
    %v880 = vrot.slane %v875, %v879
    %v882 = vcombine.high %v880, %v880
    %v884 = vadd.f32 %v781, %v880
    %v885 = vadd.f32 %v851, %v882
    %v886 = vadd.f32 %v786, %v880
    %v887 = vadd.f32 %v852, %v880
    %v888 = vadd.f32 %v791, %v882
    %v889 = vadd.f32 %v853, %v880
    %v890 = vadd.f32 %v796, %v880
    %v891 = vadd.f32 %v854, %v882
    %v892 = vadd.f32 %v801, %v880
    %v893 = vadd.f32 %v855, %v880
    %v894 = vadd.f32 %v806, %v882
    %v895 = vadd.f32 %v856, %v880
    %v896 = vadd.f32 %v811, %v880
    %v897 = vadd.f32 %v857, %v882
    %v898 = vadd.f32 %v816, %v880
    %v899 = vadd.f32 %v858, %v880
    %v900 = vadd.f32 %v821, %v882
    %v901 = vadd.f32 %v859, %v880
    %v902 = vadd.f32 %v826, %v880
    %v903 = vadd.f32 %v860, %v882
    %v904 = vadd.f32 %v831, %v880
    %v905 = vadd.f32 %v861, %v880
    %v906 = vadd.f32 %v836, %v882
    %v907 = vadd.f32 %v862, %v880
    %v908 = vmax.f32 %v884, 0.0
    %v909 = vmax.f32 %v885, 0.0
    %v910 = vmax.f32 %v886, 0.0
    %v911 = vmax.f32 %v887, 0.0
    %v912 = vmax.f32 %v888, 0.0
    %v913 = vmax.f32 %v889, 0.0
    %v914 = vmax.f32 %v890, 0.0
    %v915 = vmax.f32 %v891, 0.0
    %v916 = vmax.f32 %v892, 0.0
    %v917 = vmax.f32 %v893, 0.0
    %v918 = vmax.f32 %v894, 0.0
    %v919 = vmax.f32 %v895, 0.0
    %v920 = vmax.f32 %v896, 0.0
    %v921 = vmax.f32 %v897, 0.0
    %v922 = vmax.f32 %v898, 0.0
    %v923 = vmax.f32 %v899, 0.0
    %v924 = vmax.f32 %v900, 0.0
    %v925 = vmax.f32 %v901, 0.0
    %v926 = vmax.f32 %v902, 0.0
    %v927 = vmax.f32 %v903, 0.0
    %v928 = vmax.f32 %v904, 0.0
    %v929 = vmax.f32 %v905, 0.0
    %v930 = vmax.f32 %v906, 0.0
    %v931 = vmax.f32 %v907, 0.0
    %v932 = vlaneseq
    %v933 = vshrl.u32 %v932, 7
    %v934 = vadd.s32 %v933, 8
    %vm935 = vcmp.ge.s32.totalorder %v33, 0
    %vm936 = vcmp.lt.s32.totalorder %v33, 16
    %vm937 = vmand %vm935, %vm936
    %vm938 = vcmp.lt.s32.totalorder %v933, 10
    %vm939 = vcmp.lt.s32.totalorder %v934, 10
    %vm940 = vmand %vm937, %vm938
    %vm941 = vmand %vm937, %vm939
    %vm942 = vcmp.ge.s32.totalorder %v33, 16
    %vm943 = vcmp.lt.s32.totalorder %v33, 32
    %vm944 = vmand %vm942, %vm943
    %vm945 = vcmp.lt.s32.totalorder %v933, 11
    %vm946 = vcmp.lt.s32.totalorder %v934, 11
    %vm947 = vmand %vm944, %vm945
    %vm948 = vmand %vm944, %vm946
    %vm949 = vmor %vm940, %vm947
    %vm950 = vmor %vm941, %vm948
    %vm951 = vcmp.ge.s32.totalorder %v33, 32
    %vm952 = vcmp.lt.s32.totalorder %v33, 48
    %vm953 = vmand %vm951, %vm952
    %vm954 = vcmp.lt.s32.totalorder %v933, 12
    %vm955 = vcmp.lt.s32.totalorder %v934, 12
    %vm956 = vmand %vm953, %vm954
    %vm957 = vmand %vm953, %vm955
    %vm958 = vmor %vm949, %vm956
    %vm959 = vmor %vm950, %vm957
    %v960 = vsel %vm958, 1, 0
    %v961 = vsel %vm959, 1, 0
    %vm962 = vcmp.eq.s32.totalorder %v960, 1
    %vm963 = vcmp.eq.s32.totalorder %v961, 1
    %v980 = vcombine.low %v908, %v909
    %v981 = vcombine.low %v911, %v912
    %v982 = vcombine.low %v914, %v915
    %v983 = vcombine.low %v917, %v918
    %v984 = vcombine.low %v920, %v921
    %v985 = vcombine.low %v923, %v924
    %v986 = vcombine.low %v926, %v927
    %v987 = vcombine.low %v929, %v930
    %v996 = vsel %vm962, %v980, -1e+30
    %v997 = vsel %vm963, %v910, -1e+30
    %v998 = vsel %vm962, %v981, -1e+30
    %v999 = vsel %vm963, %v913, -1e+30
    %v1000 = vsel %vm962, %v982, -1e+30
    %v1001 = vsel %vm963, %v916, -1e+30
    %v1002 = vsel %vm962, %v983, -1e+30
    %v1003 = vsel %vm963, %v919, -1e+30
    %v1004 = vsel %vm962, %v984, -1e+30
    %v1005 = vsel %vm963, %v922, -1e+30
    %v1006 = vsel %vm962, %v985, -1e+30
    %v1007 = vsel %vm963, %v925, -1e+30
    %v1008 = vsel %vm962, %v986, -1e+30
    %v1009 = vsel %vm963, %v928, -1e+30
    %v1010 = vsel %vm962, %v987, -1e+30
    %v1011 = vsel %vm963, %v931, -1e+30
    %vm1012 = vcmask 392192
    %v1013 = vsel %vm1012, %v996, -inf
    %vm1014 = vcmask 388096
    %v1015 = vsel %vm1014, %v997, -inf
    %v1016 = vmax.f32 %v1013, %v1015
    %v1017 = vrot.slane %v1016, 4
    %v1018 = vmax.f32 %v1016, %v1017
    %v1019 = vrot.slane %v1018, 2
    %v1020 = vmax.f32 %v1018, %v1019
    %v1021 = vrot.slane %v1020, 1
    %v1022 = vmax.f32 %v1020, %v1021
    %v1023 = vsel %vm1012, %v998, -inf
    %v1024 = vsel %vm1014, %v999, -inf
    %v1025 = vmax.f32 %v1023, %v1024
    %v1026 = vrot.slane %v1025, 4
    %v1027 = vmax.f32 %v1025, %v1026
    %v1028 = vrot.slane %v1027, 2
    %v1029 = vmax.f32 %v1027, %v1028
    %v1030 = vrot.slane %v1029, 1
    %v1031 = vmax.f32 %v1029, %v1030
    %v1032 = vsel %vm1012, %v1000, -inf
    %v1033 = vsel %vm1014, %v1001, -inf
    %v1034 = vmax.f32 %v1032, %v1033
    %v1035 = vrot.slane %v1034, 4
    %v1036 = vmax.f32 %v1034, %v1035
    %v1037 = vrot.slane %v1036, 2
    %v1038 = vmax.f32 %v1036, %v1037
    %v1039 = vrot.slane %v1038, 1
    %v1040 = vmax.f32 %v1038, %v1039
    %v1041 = vsel %vm1012, %v1002, -inf
    %v1042 = vsel %vm1014, %v1003, -inf
    %v1043 = vmax.f32 %v1041, %v1042
    %v1044 = vrot.slane %v1043, 4
    %v1045 = vmax.f32 %v1043, %v1044
    %v1046 = vrot.slane %v1045, 2
    %v1047 = vmax.f32 %v1045, %v1046
    %v1048 = vrot.slane %v1047, 1
    %v1049 = vmax.f32 %v1047, %v1048
    %v1050 = vsel %vm1012, %v1004, -inf
    %v1051 = vsel %vm1014, %v1005, -inf
    %v1052 = vmax.f32 %v1050, %v1051
    %v1053 = vrot.slane %v1052, 4
    %v1054 = vmax.f32 %v1052, %v1053
    %v1055 = vrot.slane %v1054, 2
    %v1056 = vmax.f32 %v1054, %v1055
    %v1057 = vrot.slane %v1056, 1
    %v1058 = vmax.f32 %v1056, %v1057
    %v1059 = vsel %vm1012, %v1006, -inf
    %v1060 = vsel %vm1014, %v1007, -inf
    %v1061 = vmax.f32 %v1059, %v1060
    %v1062 = vrot.slane %v1061, 4
    %v1063 = vmax.f32 %v1061, %v1062
    %v1064 = vrot.slane %v1063, 2
    %v1065 = vmax.f32 %v1063, %v1064
    %v1066 = vrot.slane %v1065, 1
    %v1067 = vmax.f32 %v1065, %v1066
    %v1068 = vsel %vm1012, %v1008, -inf
    %v1069 = vsel %vm1014, %v1009, -inf
    %v1070 = vmax.f32 %v1068, %v1069
    %v1071 = vrot.slane %v1070, 4
    %v1072 = vmax.f32 %v1070, %v1071
    %v1073 = vrot.slane %v1072, 2
    %v1074 = vmax.f32 %v1072, %v1073
    %v1075 = vrot.slane %v1074, 1
    %v1076 = vmax.f32 %v1074, %v1075
    %v1077 = vsel %vm1012, %v1010, -inf
    %v1078 = vsel %vm1014, %v1011, -inf
    %v1079 = vmax.f32 %v1077, %v1078
    %v1080 = vrot.slane %v1079, 4
    %v1081 = vmax.f32 %v1079, %v1080
    %v1082 = vrot.slane %v1081, 2
    %v1083 = vmax.f32 %v1081, %v1082
    %v1084 = vrot.slane %v1083, 1
    %v1085 = vmax.f32 %v1083, %v1084
    %v1086 = vld [vmem:[%s4] sm:$0xff]
    %v1087 = vld [vmem:[%s4 + $0x8] sm:$0xff]
    %v1088 = vld [vmem:[%s4 + $0x10] sm:$0xff]
    %v1089 = vld [vmem:[%s4 + $0x18] sm:$0xff]
    %v1090 = vld [vmem:[%s4 + $0x20] sm:$0xff]
    %v1091 = vld [vmem:[%s4 + $0x28] sm:$0xff]
    %v1092 = vld [vmem:[%s5] sm:$0x1]
    %v1094 = vlaneseq
    %v1095 = vshrl.u32 %v1094, 7
    %v1096 = vsub.s32 0, %v1095
    %v1097 = vrot.slane %v1092, %v1096
    %vm1107 = vcmask 1041409
    %v1108 = vsel %vm1107, %v1031, %v1022
    %vm1109 = vcmask 1042434
    %v1110 = vsel %vm1109, %v1040, %v1108
    %vm1111 = vcmask 1043459
    %v1112 = vsel %vm1111, %v1049, %v1110
    %vm1113 = vcmask 1044484
    %v1114 = vsel %vm1113, %v1058, %v1112
    %vm1115 = vcmask 1045509
    %v1116 = vsel %vm1115, %v1067, %v1114
    %vm1117 = vcmask 1046534
    %v1118 = vsel %vm1117, %v1076, %v1116
    %vm1119 = vcmask 1047559
    %v1120 = vsel %vm1119, %v1085, %v1118
    %v1121 = vsel %vm1012, %v1120, 0
    %1123 = vmatprep.subr.mxu0 0.0
    %1124 = vmatpush1.msra.mxu0 0.0
    %1125 = vmatprep.subr.mxu0 0.0
    %1126 = vmatpush1.msra.mxu0 0.0
    %1127 = vmatprep.subr.mxu0 0.0
    %1128 = vmatpush1.msra.mxu0 0.0
    %1129 = vmatprep.subr.mxu0 0.0
    %1130 = vmatpush1.msra.mxu0 0.0
    %1131 = vmatprep.subr.mxu0 0.0
    %1132 = vmatpush1.msra.mxu0 0.0
    %1133 = vmatprep.subr.mxu0 0.0
    %1134 = vmatpush1.msra.mxu0 0.0
    %1135 = vmatprep.subr.mxu0 0.0
    %1136 = vmatpush1.msra.mxu0 0.0
    %1137 = vmatprep.subr.mxu0 0.0
    %1138 = vmatpush1.msra.mxu0 0.0
    %1139 = vmatprep.subr.mxu0 0.0
    %1140 = vmatpush1.msra.mxu0 0.0
    %1141 = vmatprep.subr.mxu0 0.0
    %1142 = vmatpush1.msra.mxu0 0.0
    %1143 = vmatprep.subr.mxu0 0.0
    %1144 = vmatpush1.msra.mxu0 %v1091
    %1145 = vmatprep.subr.mxu0 0.0
    %1146 = vmatpush1.msra.mxu0 %v1090
    %1147 = vmatprep.subr.mxu0 0.0
    %1148 = vmatpush1.msra.mxu0 %v1089
    %1149 = vmatprep.subr.mxu0 0.0
    %1150 = vmatpush1.msra.mxu0 %v1088
    %1151 = vmatprep.subr.mxu0 0.0
    %1152 = vmatpush1.msra.mxu0 %v1087
    %1153 = vmatprep.subr.mxu0 0.0
    %1154 = vmatpush1.msra.mxu0 %v1086
    %1155 = vmatprep.subr.mxu0 0.0
    %1156 = vmatpush2.msra.mxu0 0.0
    %1157 = vmatprep.subr.mxu0 0.0
    %1158 = vmatpush2.msra.mxu0 0.0
    %1159 = vmatprep.subr.mxu0 0.0
    %1160 = vmatpush2.msra.mxu0 0.0
    %1161 = vmatprep.subr.mxu0 0.0
    %1162 = vmatpush2.msra.mxu0 0.0
    %1163 = vmatprep.subr.mxu0 0.0
    %1164 = vmatpush2.msra.mxu0 0.0
    %1165 = vmatprep.subr.mxu0 0.0
    %1166 = vmatpush2.msra.mxu0 0.0
    %1167 = vmatprep.subr.mxu0 0.0
    %1168 = vmatpush2.msra.mxu0 0.0
    %1169 = vmatprep.subr.mxu0 0.0
    %1170 = vmatpush2.msra.mxu0 0.0
    %1171 = vmatprep.subr.mxu0 0.0
    %1172 = vmatpush2.msra.mxu0 0.0
    %1173 = vmatprep.subr.mxu0 0.0
    %1174 = vmatpush2.msra.mxu0 0.0
    %1175 = vmatprep.subr.mxu0 0.0
    %1176 = vmatpush2.msra.mxu0 0.0
    %1177 = vmatprep.subr.mxu0 0.0
    %1178 = vmatpush2.msra.mxu0 0.0
    %1179 = vmatprep.subr.mxu0 0.0
    %1180 = vmatpush2.msra.mxu0 0.0
    %1181 = vmatprep.subr.mxu0 0.0
    %1182 = vmatpush2.msra.mxu0 0.0
    %1183 = vmatprep.subr.mxu0 0.0
    %1184 = vmatpush2.msra.mxu0 0.0
    %1185 = vmatprep.subr.mxu0 0.0
    %1186 = vmatpush2.msra.mxu0 0.0
    %1187 = vmatprep.mubr.f32.mxu0 0.0
    %1188 = vmatmul.mubr.f32.gmra.mxu0 %v1121
    %v1189 = vpop.f32.mrf.mxu0
    %v1190 = vadd.f32 %v1097, %v1189
    %v1191 = vpop.f32.mrf.mxu0
    %1192 = vdwg.mxu0
    %1193 = vmax.xlane.f32.xlu0 %v1190
    %v1194 = vpop.xlane.xlu0 %1193
    %v1195 = vsub.f32 %v1190, %v1194
    %v1196 = vmul.f32 %v1195, 1.442695
    %v1197 = vpow.pop %v1196
    %1198 = vadd.xlane.f32.xlu0 %v1197
    %v1199 = vpop.xlane.xlu0 %1198
    %v1200 = vlog2.pop %v1199
    %v1201 = vmul.f32 %v1200, 0.6931472
    %v1202 = vsub.f32 %v1195, %v1201
    %1203 = vst [vmem:[#allocation2] sm:$0xff] %v1202
    // Predicated region
    $region26: #{tpu_custom_call.1} parent=1 // pred_check
      _
    $region27: #{tpu_custom_call.1} parent=1 // pred_check_branch
      %1205 = sbr.rel (0) target = $region29
    $region28: #{tpu_custom_call.1} parent=1 // pred_region
      %s1207 = ssub.s32 128, 128
      %1208 = vsyncadd [#allocation3], %s1207
      %s1210 = sshll.u32 [#allocation2], 4
      %s1211 = int_to_ptr.vmem [resolvable:$true] %s1210
      %1213 = dma.vmem_to_hbm [thread:$0]  %s1211, 128, %s6, [#allocation3]
    $region29: #{tpu_custom_call.1} parent=1 // pred_fallthru
      _
    // Predicated region
    $region30: #{tpu_custom_call.1} parent=1 // pred_check
      _
    $region31: #{tpu_custom_call.1} parent=1 // pred_check_branch
      %1215 = sbr.rel (0) target = $region33
    $region32: #{tpu_custom_call.1} parent=1 // pred_region
      %1216 = dma.done [#allocation3], 128
    $region33: #{tpu_custom_call.1} parent=1 // pred_fallthru
      _
    %1217 = vsyncpa [#allocation3], 1

</llo_original>
